<compile_context>
chip_gen: v7x
topology: tpu7x:2x2x1
jax: 0.10.0
libtpu: 0.0.40
codegen_flags: <defaults>
</compile_context>

<pallas_src>
import functools
import math

import jax
import jax.numpy as jnp
from jax.experimental import pallas as pl
from jax.experimental.pallas import tpu as pltpu


def _round_up(v: int, m: int) -> int:
    return ((v + m - 1) // m) * m


def _gelu_exact(x):
    # exact GELU: 0.5 * x * (1 + erf(x / sqrt(2)))  (torch.nn.GELU default)
    return 0.5 * x * (1.0 + jax.lax.erf(x * (1.0 / math.sqrt(2.0))))


def mlp_kernel(x_ref, w1_ref, b1_ref, w2_ref, b2_ref, wo_ref, bo_ref, o_ref):
    # x / weights are bf16; accumulate in f32 on the MXU, elementwise in f32.
    x = x_ref[...]

    # layer 1: Linear -> GELU -> Dropout(identity, eval mode)
    h = jnp.dot(x, w1_ref[...], preferred_element_type=jnp.float32) + b1_ref[...]
    h = _gelu_exact(h)
    # TODO(synk): training-mode dropout (p=0.2) omitted; eval-mode dropout is identity.
    h = h.astype(jnp.bfloat16)

    # layer 2: Linear -> GELU -> Dropout(identity, eval mode)
    h = jnp.dot(h, w2_ref[...], preferred_element_type=jnp.float32) + b2_ref[...]
    h = _gelu_exact(h)
    h = h.astype(jnp.bfloat16)

    # out_proj
    out = jnp.dot(h, wo_ref[...], preferred_element_type=jnp.float32) + bo_ref[...]
    o_ref[...] = out.astype(o_ref.dtype)


@functools.partial(jax.jit, static_argnames=("block_m",))
def mlp_forward(x, params, block_m=256):
    """x: [M, input_dim] float32. params: dict with PyTorch-layout weights."""
    M, input_dim = x.shape
    hidden_dim = params["w1"].shape[0]
    output_dim = params["wo"].shape[0]

    # ---- pad feature dims to 128-lane multiples, M to the tile size ----------
    din_p = _round_up(input_dim, 128)
    h_p = _round_up(hidden_dim, 128)
    dout_p = _round_up(output_dim, 128)

    # Effective M tile: large (feeds the MXU, amortizes per-step overhead), but
    # never larger than the (8-aligned) padded M so tiny inputs don't blow up.
    bm = min(block_m, _round_up(M, 8))
    m_p = _round_up(M, bm)

    # ---- weight prep (glue): PyTorch Linear stores W as [out, in] ------------
    def pad2(a, r, c):
        return jnp.pad(a, ((0, r - a.shape[0]), (0, c - a.shape[1])))

    w1 = pad2(params["w1"].T, din_p, h_p).astype(jnp.bfloat16)   # [din_p, h_p]
    w2 = pad2(params["w2"].T, h_p, h_p).astype(jnp.bfloat16)     # [h_p,   h_p]
    wo = pad2(params["wo"].T, h_p, dout_p).astype(jnp.bfloat16)  # [h_p, dout_p]
    b1 = jnp.pad(params["b1"], (0, h_p - hidden_dim))[None, :].astype(jnp.float32)
    b2 = jnp.pad(params["b2"], (0, h_p - hidden_dim))[None, :].astype(jnp.float32)
    bo = jnp.pad(params["bo"], (0, dout_p - output_dim))[None, :].astype(jnp.float32)

    x_p = jnp.pad(x, ((0, m_p - M), (0, din_p - input_dim))).astype(jnp.bfloat16)

    grid = (m_p // bm,)

    full = lambda shape: pl.BlockSpec(shape, lambda i: (0, 0))  # resident in VMEM

    # ---- cost / VMEM budgeting ------------------------------------------------
    flops = 2 * m_p * (din_p * h_p + h_p * h_p + h_p * dout_p)
    bytes_accessed = (
        m_p * din_p * 2                                   # x (bf16)
        + (din_p * h_p + h_p * h_p + h_p * dout_p) * 2    # weights (bf16)
        + (2 * h_p + dout_p) * 4                          # biases (f32)
        + m_p * dout_p * 4                                # out (f32)
    )
    transcendentals = 2 * m_p * h_p  # two erf calls per hidden element

    vmem_need = (
        2 * bm * din_p * 2                                # x double buffer (bf16)
        + 2 * bm * dout_p * 4                             # out double buffer (f32)
        + (din_p * h_p + h_p * h_p + h_p * dout_p) * 2    # resident weights (bf16)
        + (2 * h_p + dout_p) * 4                          # resident biases (f32)
        + 3 * bm * h_p * 4                                # f32 intermediates headroom
    )
    vmem_limit = min(max(int(vmem_need * 1.5), 32 * 1024 * 1024), 64 * 1024 * 1024)

    out_p = pl.pallas_call(
        mlp_kernel,
        out_shape=jax.ShapeDtypeStruct((m_p, dout_p), x.dtype),
        grid_spec=pltpu.PrefetchScalarGridSpec(
            num_scalar_prefetch=0,
            grid=grid,
            in_specs=[
                pl.BlockSpec((bm, din_p), lambda i: (i, 0)),  # streaming x rows
                full(w1.shape),
                full(b1.shape),
                full(w2.shape),
                full(b2.shape),
                full(wo.shape),
                full(bo.shape),
            ],
            out_specs=pl.BlockSpec((bm, dout_p), lambda i: (i, 0)),
        ),
        compiler_params=pltpu.CompilerParams(
            dimension_semantics=("parallel",),
            vmem_limit_bytes=vmem_limit,
        ),
        cost_estimate=pl.CostEstimate(
            flops=flops,
            transcendentals=transcendentals,
            bytes_accessed=bytes_accessed,
        ),
    )(x_p, w1, b1, w2, b2, wo, bo)

    return out_p[:M, :output_dim]


def init_mlp_params(key, input_dim, hidden_dim, output_dim):
    """Deterministic init mimicking torch.nn.Linear default (U[-1/sqrt(fan_in), +])."""
    ks = jax.random.split(key, 6)

    def lin(kw, kb, fan_in, fan_out):
        bound = 1.0 / math.sqrt(fan_in)
        w = jax.random.uniform(kw, (fan_out, fan_in), jnp.float32, -bound, bound)
        b = jax.random.uniform(kb, (fan_out,), jnp.float32, -bound, bound)
        return w, b

    w1, b1 = lin(ks[0], ks[1], input_dim, hidden_dim)
    w2, b2 = lin(ks[2], ks[3], hidden_dim, hidden_dim)
    wo, bo = lin(ks[4], ks[5], hidden_dim, output_dim)
    return {"w1": w1, "b1": b1, "w2": w2, "b2": b2, "wo": wo, "bo": bo}


def mlp_reference(x, params):
    """Pure-JAX f32 reference of the PyTorch forward (eval mode)."""
    h = jax.nn.gelu(x @ params["w1"].T + params["b1"], approximate=False)
    h = jax.nn.gelu(h @ params["w2"].T + params["b2"], approximate=False)
    return h @ params["wo"].T + params["bo"]


if __name__ == "__main__":
    key = jax.random.PRNGKey(0)
    k_x, k_p = jax.random.split(key)

    # small shapes consistent with the module: batch of 16 tokens, dims 16->32->8
    M, input_dim, hidden_dim, output_dim = 16, 16, 32, 8
    x = jax.random.normal(k_x, (M, input_dim), jnp.float32)
    params = init_mlp_params(k_p, input_dim, hidden_dim, output_dim)

    out = mlp_forward(x, params)
    out = jax.block_until_ready(out)

    ref = mlp_reference(x, params)
    assert out.shape == (M, output_dim)
    # bf16 MXU operands (f32 accumulation) -> small drift vs. the f32 reference.
    err = float(jnp.max(jnp.abs(out - ref)))
    assert jnp.allclose(out, ref, atol=5e-2, rtol=5e-2), err

    print("KERNEL_OK")
</pallas_src>

<mosaic_0001>
module attributes {stable_mosaic.version = 11 : i64} {
  func.func @mlp_kernel(%arg0: i32, %arg1: memref<16x128xbf16, #tpu.memory_space<vmem>>, %arg2: memref<128x128xbf16, #tpu.memory_space<vmem>>, %arg3: memref<1x128xf32, #tpu.memory_space<vmem>>, %arg4: memref<128x128xbf16, #tpu.memory_space<vmem>>, %arg5: memref<1x128xf32, #tpu.memory_space<vmem>>, %arg6: memref<128x128xbf16, #tpu.memory_space<vmem>>, %arg7: memref<1x128xf32, #tpu.memory_space<vmem>>, %arg8: memref<16x128xf32, #tpu.memory_space<vmem>>) attributes {dimension_semantics = [#tpu.dimension_semantics<parallel>], iteration_bounds = array<i64: 1>, scalar_prefetch = 0 : i64, scratch_operands = 0 : i64, tpu.core_type = #tpu.core_type<tc>, window_params = [{transform_indices = @transform_0, window_bounds = array<i64: 16, 128>}, {pipeline_mode = #tpu.pipeline_mode<synchronous>, transform_indices = @transform_1, window_bounds = array<i64: 128, 128>}, {pipeline_mode = #tpu.pipeline_mode<synchronous>, transform_indices = @transform_2, window_bounds = array<i64: 1, 128>}, {pipeline_mode = #tpu.pipeline_mode<synchronous>, transform_indices = @transform_3, window_bounds = array<i64: 128, 128>}, {pipeline_mode = #tpu.pipeline_mode<synchronous>, transform_indices = @transform_4, window_bounds = array<i64: 1, 128>}, {pipeline_mode = #tpu.pipeline_mode<synchronous>, transform_indices = @transform_5, window_bounds = array<i64: 128, 128>}, {pipeline_mode = #tpu.pipeline_mode<synchronous>, transform_indices = @transform_6, window_bounds = array<i64: 1, 128>}, {transform_indices = @transform_7, window_bounds = array<i64: 16, 128>}]} {
    %c0 = arith.constant 0 : index
    %c0_0 = arith.constant 0 : index
    %0 = vector.load %arg1[%c0, %c0_0] : memref<16x128xbf16, #tpu.memory_space<vmem>>, vector<16x128xbf16>
    %c0_1 = arith.constant 0 : index
    %c0_2 = arith.constant 0 : index
    %1 = vector.load %arg2[%c0_1, %c0_2] : memref<128x128xbf16, #tpu.memory_space<vmem>>, vector<128x128xbf16>
    %cst = arith.constant dense<0.000000e+00> : vector<16x128xf32>
    %2 = tpu.matmul %0, %1, %cst {dimension_numbers = #tpu.dot_dimension_numbers<[1], [0], [0], [1], [0, 0, 1, 1], [], []>} : vector<16x128xbf16>, vector<128x128xbf16>, vector<16x128xf32> -> vector<16x128xf32>
    %c0_3 = arith.constant 0 : index
    %c0_4 = arith.constant 0 : index
    %3 = vector.load %arg3[%c0_3, %c0_4] : memref<1x128xf32, #tpu.memory_space<vmem>>, vector<1x128xf32>
    %4 = vector.broadcast %3 : vector<1x128xf32> to vector<16x128xf32>
    %5 = arith.addf %2, %4 : vector<16x128xf32>
    %cst_5 = arith.constant 5.000000e-01 : f32
    %6 = vector.broadcast %cst_5 : f32 to vector<16x128xf32>
    %7 = arith.mulf %6, %5 : vector<16x128xf32>
    %cst_6 = arith.constant 0.707106769 : f32
    %8 = vector.broadcast %cst_6 : f32 to vector<16x128xf32>
    %9 = arith.mulf %5, %8 : vector<16x128xf32>
    %10 = math.erf %9 : vector<16x128xf32>
    %cst_7 = arith.constant 1.000000e+00 : f32
    %11 = vector.broadcast %cst_7 : f32 to vector<16x128xf32>
    %12 = arith.addf %11, %10 : vector<16x128xf32>
    %13 = arith.mulf %7, %12 : vector<16x128xf32>
    %14 = arith.truncf %13 : vector<16x128xf32> to vector<16x128xbf16>
    %c0_8 = arith.constant 0 : index
    %c0_9 = arith.constant 0 : index
    %15 = vector.load %arg4[%c0_8, %c0_9] : memref<128x128xbf16, #tpu.memory_space<vmem>>, vector<128x128xbf16>
    %cst_10 = arith.constant dense<0.000000e+00> : vector<16x128xf32>
    %16 = tpu.matmul %14, %15, %cst_10 {dimension_numbers = #tpu.dot_dimension_numbers<[1], [0], [0], [1], [0, 0, 1, 1], [], []>} : vector<16x128xbf16>, vector<128x128xbf16>, vector<16x128xf32> -> vector<16x128xf32>
    %c0_11 = arith.constant 0 : index
    %c0_12 = arith.constant 0 : index
    %17 = vector.load %arg5[%c0_11, %c0_12] : memref<1x128xf32, #tpu.memory_space<vmem>>, vector<1x128xf32>
    %18 = vector.broadcast %17 : vector<1x128xf32> to vector<16x128xf32>
    %19 = arith.addf %16, %18 : vector<16x128xf32>
    %cst_13 = arith.constant 5.000000e-01 : f32
    %20 = vector.broadcast %cst_13 : f32 to vector<16x128xf32>
    %21 = arith.mulf %20, %19 : vector<16x128xf32>
    %cst_14 = arith.constant 0.707106769 : f32
    %22 = vector.broadcast %cst_14 : f32 to vector<16x128xf32>
    %23 = arith.mulf %19, %22 : vector<16x128xf32>
    %24 = math.erf %23 : vector<16x128xf32>
    %cst_15 = arith.constant 1.000000e+00 : f32
    %25 = vector.broadcast %cst_15 : f32 to vector<16x128xf32>
    %26 = arith.addf %25, %24 : vector<16x128xf32>
    %27 = arith.mulf %21, %26 : vector<16x128xf32>
    %28 = arith.truncf %27 : vector<16x128xf32> to vector<16x128xbf16>
    %c0_16 = arith.constant 0 : index
    %c0_17 = arith.constant 0 : index
    %29 = vector.load %arg6[%c0_16, %c0_17] : memref<128x128xbf16, #tpu.memory_space<vmem>>, vector<128x128xbf16>
    %cst_18 = arith.constant dense<0.000000e+00> : vector<16x128xf32>
    %30 = tpu.matmul %28, %29, %cst_18 {dimension_numbers = #tpu.dot_dimension_numbers<[1], [0], [0], [1], [0, 0, 1, 1], [], []>} : vector<16x128xbf16>, vector<128x128xbf16>, vector<16x128xf32> -> vector<16x128xf32>
    %c0_19 = arith.constant 0 : index
    %c0_20 = arith.constant 0 : index
    %31 = vector.load %arg7[%c0_19, %c0_20] : memref<1x128xf32, #tpu.memory_space<vmem>>, vector<1x128xf32>
    %32 = vector.broadcast %31 : vector<1x128xf32> to vector<16x128xf32>
    %33 = arith.addf %30, %32 : vector<16x128xf32>
    %c0_21 = arith.constant 0 : index
    %c0_22 = arith.constant 0 : index
    %34 = vector.load %arg8[%c0_21, %c0_22] : memref<16x128xf32, #tpu.memory_space<vmem>>, vector<16x128xf32>
    tpu.vector_store %arg8[%c0_21, %c0_22], %33 {strides = array<i32>} : memref<16x128xf32, #tpu.memory_space<vmem>>, vector<16x128xf32>,
    return
  }
  func.func @transform_0(%arg0: i32) -> (i32, i32) {
    %c0_i32 = arith.constant 0 : i32
    %c0_i32_0 = arith.constant 0 : i32
    return %arg0, %c0_i32 : i32, i32
  }
  func.func @transform_1(%arg0: i32) -> (i32, i32) {
    %c0_i32 = arith.constant 0 : i32
    %c0_i32_0 = arith.constant 0 : i32
    %c0_i32_1 = arith.constant 0 : i32
    return %c0_i32, %c0_i32_0 : i32, i32
  }
  func.func @transform_2(%arg0: i32) -> (i32, i32) {
    %c0_i32 = arith.constant 0 : i32
    %c0_i32_0 = arith.constant 0 : i32
    %c0_i32_1 = arith.constant 0 : i32
    return %c0_i32, %c0_i32_0 : i32, i32
  }
  func.func @transform_3(%arg0: i32) -> (i32, i32) {
    %c0_i32 = arith.constant 0 : i32
    %c0_i32_0 = arith.constant 0 : i32
    %c0_i32_1 = arith.constant 0 : i32
    return %c0_i32, %c0_i32_0 : i32, i32
  }
  func.func @transform_4(%arg0: i32) -> (i32, i32) {
    %c0_i32 = arith.constant 0 : i32
    %c0_i32_0 = arith.constant 0 : i32
    %c0_i32_1 = arith.constant 0 : i32
    return %c0_i32, %c0_i32_0 : i32, i32
  }
  func.func @transform_5(%arg0: i32) -> (i32, i32) {
    %c0_i32 = arith.constant 0 : i32
    %c0_i32_0 = arith.constant 0 : i32
    %c0_i32_1 = arith.constant 0 : i32
    return %c0_i32, %c0_i32_0 : i32, i32
  }
  func.func @transform_6(%arg0: i32) -> (i32, i32) {
    %c0_i32 = arith.constant 0 : i32
    %c0_i32_0 = arith.constant 0 : i32
    %c0_i32_1 = arith.constant 0 : i32
    return %c0_i32, %c0_i32_0 : i32, i32
  }
  func.func @transform_7(%arg0: i32) -> (i32, i32) {
    %c0_i32 = arith.constant 0 : i32
    %c0_i32_0 = arith.constant 0 : i32
    return %arg0, %c0_i32 : i32, i32
  }
}

</mosaic_0001>

<llo_original>
// kernel: mlp_forward.1
$region0: #{mlp_forward.1}
  #allocation0 [shape = 'u32[]', space=smem, size = 0x4, offset = 0x4, fixed_abs, tag = 'smem constant byte address 0x4 - core index']
  #allocation1 [shape = 'u32[144,128]{1,0:T(1,128)}', space=vmem, size = 0x12000, scoped, tag = 'internal scratch']
  %s0 = inlined_call_operand.vmem [shape: bf16[16,128], index: 0, kind: input, shape index: {}]
  %s1 = inlined_call_operand.vmem [shape: bf16[128,128], index: 1, kind: input, shape index: {}]
  %s2 = inlined_call_operand.vmem [shape: f32[1,128], index: 2, kind: input, shape index: {}]
  %s3 = inlined_call_operand.vmem [shape: bf16[128,128], index: 3, kind: input, shape index: {}]
  %s4 = inlined_call_operand.vmem [shape: f32[1,128], index: 4, kind: input, shape index: {}]
  %s5 = inlined_call_operand.vmem [shape: bf16[128,128], index: 5, kind: input, shape index: {}]
  %s6 = inlined_call_operand.vmem [shape: f32[1,128], index: 6, kind: input, shape index: {}]
  %s7 = inlined_call_operand.vmem [shape: f32[16,128], index: 7, kind: output, shape index: {}]
  %s8 = sld [smem:[#allocation0]]
  $region38: #{mlp_forward.1} parent=0
    _
  %s10 = ssub.s32 1, %s8
  %s11 = scalar_select 0, %s10, %s8
  // Predicated region
  $region2: #{mlp_forward.1} parent=0 // pred_check
    _
  $region3: #{mlp_forward.1} parent=0 // pred_check_branch
    %13 = sbr.rel (0) target = $region5
  $region4: #{mlp_forward.1} parent=0 // pred_region
    _
  $region5: #{mlp_forward.1} parent=0 // pred_fallthru
    _
  // Predicated region
  $region6: #{mlp_forward.1} parent=0 // pred_check
    _
  $region7: #{mlp_forward.1} parent=0 // pred_check_branch
    %15 = sbr.rel (0) target = $region9
  $region8: #{mlp_forward.1} parent=0 // pred_region
    _
  $region9: #{mlp_forward.1} parent=0 // pred_fallthru
    _
  // Predicated region
  $region10: #{mlp_forward.1} parent=0 // pred_check
    _
  $region11: #{mlp_forward.1} parent=0 // pred_check_branch
    %17 = sbr.rel (0) target = $region13
  $region12: #{mlp_forward.1} parent=0 // pred_region
    _
  $region13: #{mlp_forward.1} parent=0 // pred_fallthru
    _
  // Predicated region
  $region14: #{mlp_forward.1} parent=0 // pred_check
    _
  $region15: #{mlp_forward.1} parent=0 // pred_check_branch
    %19 = sbr.rel (0) target = $region17
  $region16: #{mlp_forward.1} parent=0 // pred_region
    _
  $region17: #{mlp_forward.1} parent=0 // pred_fallthru
    _
  // Predicated region
  $region18: #{mlp_forward.1} parent=0 // pred_check
    _
  $region19: #{mlp_forward.1} parent=0 // pred_check_branch
    %21 = sbr.rel (0) target = $region21
  $region20: #{mlp_forward.1} parent=0 // pred_region
    _
  $region21: #{mlp_forward.1} parent=0 // pred_fallthru
    _
  // Predicated region
  $region22: #{mlp_forward.1} parent=0 // pred_check
    _
  $region23: #{mlp_forward.1} parent=0 // pred_check_branch
    %23 = sbr.rel (0) target = $region25
  $region24: #{mlp_forward.1} parent=0 // pred_region
    _
  $region25: #{mlp_forward.1} parent=0 // pred_fallthru
    _
  // Predicated region
  $region26: #{mlp_forward.1} parent=0 // pred_check
    _
  $region27: #{mlp_forward.1} parent=0 // pred_check_branch
    %25 = sbr.rel (0) target = $region29
  $region28: #{mlp_forward.1} parent=0 // pred_region
    _
  $region29: #{mlp_forward.1} parent=0 // pred_fallthru
    _
  %v27 = vld [vmem:[%s0] sm:$0xf]
  %v28 = vld [vmem:[%s0 + $0x4] sm:$0xf]
  %v29 = vld [vmem:[%s1] sm:$0xf]
  %v30 = vld [vmem:[%s1 + $0x4] sm:$0xf]
  %v31 = vld [vmem:[%s1 + $0x8] sm:$0xf]
  %v32 = vld [vmem:[%s1 + $0xc] sm:$0xf]
  %v33 = vld [vmem:[%s1 + $0x10] sm:$0xf]
  %v34 = vld [vmem:[%s1 + $0x14] sm:$0xf]
  %v35 = vld [vmem:[%s1 + $0x18] sm:$0xf]
  %v36 = vld [vmem:[%s1 + $0x1c] sm:$0xf]
  %v37 = vld [vmem:[%s1 + $0x20] sm:$0xf]
  %v38 = vld [vmem:[%s1 + $0x24] sm:$0xf]
  %v39 = vld [vmem:[%s1 + $0x28] sm:$0xf]
  %v40 = vld [vmem:[%s1 + $0x2c] sm:$0xf]
  %v41 = vld [vmem:[%s1 + $0x30] sm:$0xf]
  %v42 = vld [vmem:[%s1 + $0x34] sm:$0xf]
  %v43 = vld [vmem:[%s1 + $0x38] sm:$0xf]
  %v44 = vld [vmem:[%s1 + $0x3c] sm:$0xf]
  %v45 = vld [vmem:[%s2] sm:$0x1]
  %v47 = vlaneseq
  %v48 = vshrl.u32 %v47, 7
  %v49 = vsub.s32 0, %v48
  %v50 = vrot.slane %v45, %v49
  %v54 = vunpack.c.l.b16 %v27
  %v55 = vunpack.c.l.b16 %v28
  %v56 = vpack.c.b16 %v55, %v54
  %v74 = vunpack.c.l.b16 %v29
  %v75 = vunpack.c.l.b16 %v30
  %v76 = vunpack.c.l.b16 %v31
  %v77 = vunpack.c.l.b16 %v32
  %v78 = vunpack.c.l.b16 %v33
  %v79 = vunpack.c.l.b16 %v34
  %v80 = vunpack.c.l.b16 %v35
  %v81 = vunpack.c.l.b16 %v36
  %v82 = vunpack.c.l.b16 %v37
  %v83 = vunpack.c.l.b16 %v38
  %v84 = vunpack.c.l.b16 %v39
  %v85 = vunpack.c.l.b16 %v40
  %v86 = vunpack.c.l.b16 %v41
  %v87 = vunpack.c.l.b16 %v42
  %v88 = vunpack.c.l.b16 %v43
  %v89 = vunpack.c.l.b16 %v44
  %v90 = vpack.c.b16 %v75, %v74
  %v91 = vpack.c.b16 %v77, %v76
  %v92 = vpack.c.b16 %v79, %v78
  %v93 = vpack.c.b16 %v81, %v80
  %v94 = vpack.c.b16 %v83, %v82
  %v95 = vpack.c.b16 %v85, %v84
  %v96 = vpack.c.b16 %v87, %v86
  %v97 = vpack.c.b16 %v89, %v88
  %106 = vmatprep.subr.bf16.mxu0 0
  %107 = vmatpush1.bf16.msra.mxu0 %v90
  %108 = vmatprep.subr.bf16.mxu0 0
  %109 = vmatpush1.bf16.msra.mxu0 %v91
  %110 = vmatprep.subr.bf16.mxu0 0
  %111 = vmatpush1.bf16.msra.mxu0 %v92
  %112 = vmatprep.subr.bf16.mxu0 0
  %113 = vmatpush1.bf16.msra.mxu0 %v93
  %114 = vmatprep.subr.bf16.mxu0 0
  %115 = vmatpush1.bf16.msra.mxu0 %v94
  %116 = vmatprep.subr.bf16.mxu0 0
  %117 = vmatpush1.bf16.msra.mxu0 %v95
  %118 = vmatprep.subr.bf16.mxu0 0
  %119 = vmatpush1.bf16.msra.mxu0 %v96
  %120 = vmatprep.subr.bf16.mxu0 0
  %121 = vmatpush1.bf16.msra.mxu0 %v97
  %122 = vmatprep.subr.bf16.mxu0 0
  %123 = vmatpush1.bf16.msra.mxu0 0
  %124 = vmatprep.subr.bf16.mxu0 0
  %125 = vmatpush1.bf16.msra.mxu0 0
  %126 = vmatprep.subr.bf16.mxu0 0
  %127 = vmatpush1.bf16.msra.mxu0 0
  %128 = vmatprep.subr.bf16.mxu0 0
  %129 = vmatpush1.bf16.msra.mxu0 0
  %130 = vmatprep.subr.bf16.mxu0 0
  %131 = vmatpush1.bf16.msra.mxu0 0
  %132 = vmatprep.subr.bf16.mxu0 0
  %133 = vmatpush1.bf16.msra.mxu0 0
  %134 = vmatprep.subr.bf16.mxu0 0
  %135 = vmatpush1.bf16.msra.mxu0 0
  %136 = vmatprep.subr.bf16.mxu0 0
  %137 = vmatpush1.bf16.msra.mxu0 0
  %138 = vmatprep.mubr.bf16.mxu0 0
  %139 = vmatmul.mubr.bf16.gmra.mrb[0].mxu0 %v56
  %v140 = vpop.f32.mrb[0].mxu0
  %v141 = vadd.f32 %v50, %v140
  %v142 = vpop.f32.mrb[0].mxu0
  %v143 = vpop.f32.mrb[0].mxu0
  %v144 = vadd.f32 %v50, %v143
  %v145 = vpop.f32.mrb[0].mxu0
  %146 = vdwg.mxu0
  %v147 = vmul.f32 %v141, 0.5
  %v148 = vmul.f32 %v144, 0.5
  %v149 = vmul.f32 %v141, 0.70710677
  %v150 = vmul.f32 %v144, 0.70710677
  %v151 = verf.f32.pop %v149
  %v152 = verf.f32.pop %v150
  %v153 = vadd.f32 %v151, 1.0
  %v154 = vadd.f32 %v152, 1.0
  %v155 = vmul.f32 %v147, %v153
  %v156 = vmul.f32 %v148, %v154
  %v157 = vpack.c.bf16 %v156, %v155
  %v158 = vld [vmem:[%s3] sm:$0xf]
  %v159 = vld [vmem:[%s3 + $0x4] sm:$0xf]
  %v160 = vld [vmem:[%s3 + $0x8] sm:$0xf]
  %v161 = vld [vmem:[%s3 + $0xc] sm:$0xf]
  %v162 = vld [vmem:[%s3 + $0x10] sm:$0xf]
  %v163 = vld [vmem:[%s3 + $0x14] sm:$0xf]
  %v164 = vld [vmem:[%s3 + $0x18] sm:$0xf]
  %v165 = vld [vmem:[%s3 + $0x1c] sm:$0xf]
  %v166 = vld [vmem:[%s3 + $0x20] sm:$0xf]
  %v167 = vld [vmem:[%s3 + $0x24] sm:$0xf]
  %v168 = vld [vmem:[%s3 + $0x28] sm:$0xf]
  %v169 = vld [vmem:[%s3 + $0x2c] sm:$0xf]
  %v170 = vld [vmem:[%s3 + $0x30] sm:$0xf]
  %v171 = vld [vmem:[%s3 + $0x34] sm:$0xf]
  %v172 = vld [vmem:[%s3 + $0x38] sm:$0xf]
  %v173 = vld [vmem:[%s3 + $0x3c] sm:$0xf]
  %v174 = vld [vmem:[%s4] sm:$0x1]
  %v176 = vlaneseq
  %v177 = vshrl.u32 %v176, 7
  %v178 = vsub.s32 0, %v177
  %v179 = vrot.slane %v174, %v178
  %v197 = vunpack.c.l.b16 %v158
  %v198 = vunpack.c.l.b16 %v159
  %v199 = vunpack.c.l.b16 %v160
  %v200 = vunpack.c.l.b16 %v161
  %v201 = vunpack.c.l.b16 %v162
  %v202 = vunpack.c.l.b16 %v163
  %v203 = vunpack.c.l.b16 %v164
  %v204 = vunpack.c.l.b16 %v165
  %v205 = vunpack.c.l.b16 %v166
  %v206 = vunpack.c.l.b16 %v167
  %v207 = vunpack.c.l.b16 %v168
  %v208 = vunpack.c.l.b16 %v169
  %v209 = vunpack.c.l.b16 %v170
  %v210 = vunpack.c.l.b16 %v171
  %v211 = vunpack.c.l.b16 %v172
  %v212 = vunpack.c.l.b16 %v173
  %v213 = vpack.c.b16 %v198, %v197
  %v214 = vpack.c.b16 %v200, %v199
  %v215 = vpack.c.b16 %v202, %v201
  %v216 = vpack.c.b16 %v204, %v203
  %v217 = vpack.c.b16 %v206, %v205
  %v218 = vpack.c.b16 %v208, %v207
  %v219 = vpack.c.b16 %v210, %v209
  %v220 = vpack.c.b16 %v212, %v211
  %229 = vmatprep.subr.bf16.mxu0 0
  %230 = vmatpush1.bf16.msra.mxu0 %v213
  %231 = vmatprep.subr.bf16.mxu0 0
  %232 = vmatpush1.bf16.msra.mxu0 %v214
  %233 = vmatprep.subr.bf16.mxu0 0
  %234 = vmatpush1.bf16.msra.mxu0 %v215
  %235 = vmatprep.subr.bf16.mxu0 0
  %236 = vmatpush1.bf16.msra.mxu0 %v216
  %237 = vmatprep.subr.bf16.mxu0 0
  %238 = vmatpush1.bf16.msra.mxu0 %v217
  %239 = vmatprep.subr.bf16.mxu0 0
  %240 = vmatpush1.bf16.msra.mxu0 %v218
  %241 = vmatprep.subr.bf16.mxu0 0
  %242 = vmatpush1.bf16.msra.mxu0 %v219
  %243 = vmatprep.subr.bf16.mxu0 0
  %244 = vmatpush1.bf16.msra.mxu0 %v220
  %245 = vmatprep.subr.bf16.mxu0 0
  %246 = vmatpush1.bf16.msra.mxu0 0
  %247 = vmatprep.subr.bf16.mxu0 0
  %248 = vmatpush1.bf16.msra.mxu0 0
  %249 = vmatprep.subr.bf16.mxu0 0
  %250 = vmatpush1.bf16.msra.mxu0 0
  %251 = vmatprep.subr.bf16.mxu0 0
  %252 = vmatpush1.bf16.msra.mxu0 0
  %253 = vmatprep.subr.bf16.mxu0 0
  %254 = vmatpush1.bf16.msra.mxu0 0
  %255 = vmatprep.subr.bf16.mxu0 0
  %256 = vmatpush1.bf16.msra.mxu0 0
  %257 = vmatprep.subr.bf16.mxu0 0
  %258 = vmatpush1.bf16.msra.mxu0 0
  %259 = vmatprep.subr.bf16.mxu0 0
  %260 = vmatpush1.bf16.msra.mxu0 0
  %261 = vmatprep.mubr.bf16.mxu0 0
  %262 = vmatmul.mubr.bf16.gmra.mrb[0].mxu0 %v157
  %v263 = vpop.f32.mrb[0].mxu0
  %v264 = vadd.f32 %v179, %v263
  %v265 = vpop.f32.mrb[0].mxu0
  %v266 = vpop.f32.mrb[0].mxu0
  %v267 = vadd.f32 %v179, %v266
  %v268 = vpop.f32.mrb[0].mxu0
  %269 = vdwg.mxu0
  %v270 = vmul.f32 %v264, 0.5
  %v271 = vmul.f32 %v267, 0.5
  %v272 = vmul.f32 %v264, 0.70710677
  %v273 = vmul.f32 %v267, 0.70710677
  %v274 = verf.f32.pop %v272
  %v275 = verf.f32.pop %v273
  %v276 = vadd.f32 %v274, 1.0
  %v277 = vadd.f32 %v275, 1.0
  %v278 = vmul.f32 %v270, %v276
  %v279 = vmul.f32 %v271, %v277
  %v280 = vpack.c.bf16 %v279, %v278
  %v281 = vld [vmem:[%s5] sm:$0xf]
  %v282 = vld [vmem:[%s5 + $0x4] sm:$0xf]
  %v283 = vld [vmem:[%s5 + $0x8] sm:$0xf]
  %v284 = vld [vmem:[%s5 + $0xc] sm:$0xf]
  %v285 = vld [vmem:[%s5 + $0x10] sm:$0xf]
  %v286 = vld [vmem:[%s5 + $0x14] sm:$0xf]
  %v287 = vld [vmem:[%s5 + $0x18] sm:$0xf]
  %v288 = vld [vmem:[%s5 + $0x1c] sm:$0xf]
  %v289 = vld [vmem:[%s5 + $0x20] sm:$0xf]
  %v290 = vld [vmem:[%s5 + $0x24] sm:$0xf]
  %v291 = vld [vmem:[%s5 + $0x28] sm:$0xf]
  %v292 = vld [vmem:[%s5 + $0x2c] sm:$0xf]
  %v293 = vld [vmem:[%s5 + $0x30] sm:$0xf]
  %v294 = vld [vmem:[%s5 + $0x34] sm:$0xf]
  %v295 = vld [vmem:[%s5 + $0x38] sm:$0xf]
  %v296 = vld [vmem:[%s5 + $0x3c] sm:$0xf]
  %v297 = vld [vmem:[%s6] sm:$0x1]
  %v299 = vlaneseq
  %v300 = vshrl.u32 %v299, 7
  %v301 = vsub.s32 0, %v300
  %v302 = vrot.slane %v297, %v301
  %v320 = vunpack.c.l.b16 %v281
  %v321 = vunpack.c.l.b16 %v282
  %v322 = vunpack.c.l.b16 %v283
  %v323 = vunpack.c.l.b16 %v284
  %v324 = vunpack.c.l.b16 %v285
  %v325 = vunpack.c.l.b16 %v286
  %v326 = vunpack.c.l.b16 %v287
  %v327 = vunpack.c.l.b16 %v288
  %v328 = vunpack.c.l.b16 %v289
  %v329 = vunpack.c.l.b16 %v290
  %v330 = vunpack.c.l.b16 %v291
  %v331 = vunpack.c.l.b16 %v292
  %v332 = vunpack.c.l.b16 %v293
  %v333 = vunpack.c.l.b16 %v294
  %v334 = vunpack.c.l.b16 %v295
  %v335 = vunpack.c.l.b16 %v296
  %v336 = vpack.c.b16 %v321, %v320
  %v337 = vpack.c.b16 %v323, %v322
  %v338 = vpack.c.b16 %v325, %v324
  %v339 = vpack.c.b16 %v327, %v326
  %v340 = vpack.c.b16 %v329, %v328
  %v341 = vpack.c.b16 %v331, %v330
  %v342 = vpack.c.b16 %v333, %v332
  %v343 = vpack.c.b16 %v335, %v334
  %352 = vmatprep.subr.bf16.mxu0 0
  %353 = vmatpush1.bf16.msra.mxu0 %v336
  %354 = vmatprep.subr.bf16.mxu0 0
  %355 = vmatpush1.bf16.msra.mxu0 %v337
  %356 = vmatprep.subr.bf16.mxu0 0
  %357 = vmatpush1.bf16.msra.mxu0 %v338
  %358 = vmatprep.subr.bf16.mxu0 0
  %359 = vmatpush1.bf16.msra.mxu0 %v339
  %360 = vmatprep.subr.bf16.mxu0 0
  %361 = vmatpush1.bf16.msra.mxu0 %v340
  %362 = vmatprep.subr.bf16.mxu0 0
  %363 = vmatpush1.bf16.msra.mxu0 %v341
  %364 = vmatprep.subr.bf16.mxu0 0
  %365 = vmatpush1.bf16.msra.mxu0 %v342
  %366 = vmatprep.subr.bf16.mxu0 0
  %367 = vmatpush1.bf16.msra.mxu0 %v343
  %368 = vmatprep.subr.bf16.mxu0 0
  %369 = vmatpush1.bf16.msra.mxu0 0
  %370 = vmatprep.subr.bf16.mxu0 0
  %371 = vmatpush1.bf16.msra.mxu0 0
  %372 = vmatprep.subr.bf16.mxu0 0
  %373 = vmatpush1.bf16.msra.mxu0 0
  %374 = vmatprep.subr.bf16.mxu0 0
  %375 = vmatpush1.bf16.msra.mxu0 0
  %376 = vmatprep.subr.bf16.mxu0 0
  %377 = vmatpush1.bf16.msra.mxu0 0
  %378 = vmatprep.subr.bf16.mxu0 0
  %379 = vmatpush1.bf16.msra.mxu0 0
  %380 = vmatprep.subr.bf16.mxu0 0
  %381 = vmatpush1.bf16.msra.mxu0 0
  %382 = vmatprep.subr.bf16.mxu0 0
  %383 = vmatpush1.bf16.msra.mxu0 0
  %384 = vmatprep.mubr.bf16.mxu0 0
  %385 = vmatmul.mubr.bf16.gmra.mrb[0].mxu0 %v280
  %v386 = vpop.f32.mrb[0].mxu0
  %v387 = vadd.f32 %v302, %v386
  %v388 = vpop.f32.mrb[0].mxu0
  %v389 = vpop.f32.mrb[0].mxu0
  %v390 = vadd.f32 %v302, %v389
  %v391 = vpop.f32.mrb[0].mxu0
  %392 = vdwg.mxu0
  %393 = vst [vmem:[%s7] sm:$0xff] %v387
  %394 = vst [vmem:[%s7 + $0x8] sm:$0xff] %v390
  // Predicated region
  $region30: #{mlp_forward.1} parent=0 // pred_check
    _
  $region31: #{mlp_forward.1} parent=0 // pred_check_branch
    %396 = sbr.rel (0) target = $region33
  $region32: #{mlp_forward.1} parent=0 // pred_region
    _
  $region33: #{mlp_forward.1} parent=0 // pred_fallthru
    _
  // Predicated region
  $region34: #{mlp_forward.1} parent=0 // pred_check
    _
  $region35: #{mlp_forward.1} parent=0 // pred_check_branch
    %398 = sbr.rel (0) target = $region37
  $region36: #{mlp_forward.1} parent=0 // pred_region
    _
  $region37: #{mlp_forward.1} parent=0 // pred_fallthru
    _

</llo_original>
